<compile_context>
chip_gen: v6e
topology: v6e:2x2x1
jax: 0.10.0
libtpu: 0.0.40
codegen_flags: <defaults>
</compile_context>

<pallas_src>
import jax
import jax.numpy as jnp
from jax import lax
from jax.experimental import pallas as pl
from jax.experimental.pallas import tpu as pltpu


_VMEM_STEP_BUDGET = 12 * 1024 * 1024   # per-grid-step working-set target
_VMEM_LIMIT_BYTES = 32 * 1024 * 1024   # scoped VMEM limit (safe on v5e/v6e/v7x)


def _bilinear_matrix(in_size: int, out_size: int) -> jnp.ndarray:
    """(out_size, in_size) interpolation matrix, align_corners=False semantics."""
    dst = jnp.arange(out_size, dtype=jnp.float32)
    scale = in_size / out_size
    src = (dst + 0.5) * scale - 0.5
    src = jnp.maximum(src, 0.0)                    # PyTorch clamps negative src to 0
    lo = jnp.floor(src).astype(jnp.int32)
    lo = jnp.minimum(lo, in_size - 1)
    hi = jnp.minimum(lo + 1, in_size - 1)
    w_hi = src - lo.astype(jnp.float32)
    w_lo = 1.0 - w_hi
    rows = jnp.arange(out_size)
    m = jnp.zeros((out_size, in_size), dtype=jnp.float32)
    m = m.at[rows, lo].add(w_lo)
    m = m.at[rows, hi].add(w_hi)
    return m


# --------------------------------------------------------------------------
# Kernels.  Block shapes:
#   x_ref:   (BC, H_in,  W_in)    -- full spatial slice for BC (n,c) pairs
#   uh_ref:  (TH_out, H_in)       -- row band of the height interp matrix
#   uwt_ref: (W_in, W_out)        -- transposed width interp matrix
#   o_ref:   (BC, TH_out, W_out)
# --------------------------------------------------------------------------

def _upsample_kernel_width_first(x_ref, uh_ref, uwt_ref, o_ref):
    bc, h_in, w_in = x_ref.shape
    th_out = uh_ref.shape[0]
    w_out = uwt_ref.shape[1]
    # Width pass: one big MXU matmul over all BC*H_in rows (f32 accumulate).
    x2 = x_ref[...].reshape(bc * h_in, w_in)
    tmp = jnp.dot(x2, uwt_ref[...], preferred_element_type=jnp.float32)      # (bc*h_in, w_out)
    tmp = tmp.reshape(bc, h_in, w_out).astype(uh_ref.dtype)
    # Height pass: batched matmul; output lands directly as (bc, th_out, w_out).
    uh_b = jnp.broadcast_to(uh_ref[...][None, :, :], (bc, th_out, h_in))
    out = jnp.einsum("boh,bhw->bow", uh_b, tmp,
                     preferred_element_type=jnp.float32)
    o_ref[...] = out.astype(o_ref.dtype)


def _upsample_kernel_height_first(x_ref, uh_ref, uwt_ref, o_ref):
    bc, h_in, w_in = x_ref.shape
    th_out = uh_ref.shape[0]
    w_out = uwt_ref.shape[1]
    # Height pass first (batched matmul over the BC slices).
    uh_b = jnp.broadcast_to(uh_ref[...][None, :, :], (bc, th_out, h_in))
    tmp = jnp.einsum("boh,bhw->bow", uh_b, x_ref[...],
                     preferred_element_type=jnp.float32)                     # (bc, th_out, w_in)
    tmp = tmp.reshape(bc * th_out, w_in).astype(uwt_ref.dtype)
    # Width pass: one big MXU matmul with M = bc*th_out.
    out = jnp.dot(tmp, uwt_ref[...], preferred_element_type=jnp.float32)     # (bc*th_out, w_out)
    o_ref[...] = out.reshape(bc, th_out, w_out).astype(o_ref.dtype)


# --------------------------------------------------------------------------
# Tiling heuristics.
# --------------------------------------------------------------------------

def _divisors_desc(n: int):
    return [d for d in range(n, 0, -1) if n % d == 0]


def _step_vmem_bytes(bc, th_out, h_in, w_in, w_out, elem_bytes):
    x_blk = 2 * bc * h_in * w_in * elem_bytes          # double-buffered input block
    o_blk = 2 * bc * th_out * w_out * elem_bytes       # double-buffered output block
    uh_blk = 2 * th_out * h_in * elem_bytes
    uwt_blk = 2 * w_in * w_out * elem_bytes
    f32_tmp = 4 * bc * (max(h_in * w_out, th_out * w_in) + th_out * w_out)
    uh_bcast = bc * th_out * h_in * elem_bytes
    return x_blk + o_blk + uh_blk + uwt_blk + f32_tmp + uh_bcast


def _pick_tiles(nc, h_in, w_in, h_out, w_out, elem_bytes):
    # TH_out must divide H_out and be a multiple of 8 (or equal H_out) so the
    # (TH_out, ...) block dims satisfy the (8, 128) BlockSpec constraint.
    th_cands = [d for d in _divisors_desc(h_out) if d % 8 == 0 or d == h_out]
    th_out = th_cands[-1]
    for d in th_cands:
        if _step_vmem_bytes(1, d, h_in, w_in, w_out, elem_bytes) <= _VMEM_STEP_BUDGET:
            th_out = d
            break
    # Largest channel block (divisor of NC) that still fits the VMEM budget.
    bc = 1
    for d in _divisors_desc(nc):
        if _step_vmem_bytes(d, th_out, h_in, w_in, w_out, elem_bytes) <= _VMEM_STEP_BUDGET:
            bc = d
            break
    # Keep >= 2 grid steps so both v7x TensorCores get work.
    while bc > 1 and (nc // bc) * (h_out // th_out) < 2:
        bc = max(d for d in _divisors_desc(nc) if d < bc)
    return bc, th_out


# --------------------------------------------------------------------------
# Wrapper.
# --------------------------------------------------------------------------

def bilinear_upsample_pallas(x: jnp.ndarray, scale: int) -> jnp.ndarray:
    """Bilinear upsample (align_corners=False) of an NCHW tensor by `scale`."""
    if x.dtype not in (jnp.float32, jnp.bfloat16):
        x = x.astype(jnp.float32)
    n, c, h, w = x.shape
    nc = n * c
    h_out, w_out = h * scale, w * scale

    # Weights follow the input dtype: bf16 inputs take the native bf16 MXU
    # path (f32 accumulation); f32 inputs keep a full f32 path.
    compute_dtype = jnp.bfloat16 if x.dtype == jnp.bfloat16 else jnp.float32
    uh = _bilinear_matrix(h, h_out).astype(compute_dtype)       # (H_out, H_in)
    uwt = _bilinear_matrix(w, w_out).T.astype(compute_dtype)    # (W_in,  W_out)
    x_flat = x.reshape(nc, h, w)

    elem_bytes = x.dtype.itemsize
    bc, th_out = _pick_tiles(nc, h, w, h_out, w_out, elem_bytes)
    n_h_tiles = h_out // th_out
    grid = (nc // bc, n_h_tiles)   # h-tile axis innermost -> x block re-used across it

    # Pick the cheaper matmul order (per channel, per h-tile MACs).
    wf_macs = h * w * w_out + th_out * h * w_out          # width pass then height pass
    hf_macs = th_out * h * w + th_out * w * w_out          # height pass then width pass
    kernel = (_upsample_kernel_width_first if wf_macs <= hf_macs
              else _upsample_kernel_height_first)

    total_macs = nc * n_h_tiles * min(wf_macs, hf_macs)
    out_bytes = nc * h_out * w_out * elem_bytes
    cost = pl.CostEstimate(
        flops=2 * total_macs,
        transcendentals=0,
        bytes_accessed=(x_flat.size * elem_bytes + out_bytes
                        + uh.size * uh.dtype.itemsize + uwt.size * uwt.dtype.itemsize),
    )

    out = pl.pallas_call(
        kernel,
        out_shape=jax.ShapeDtypeStruct((nc, h_out, w_out), x.dtype),
        grid_spec=pltpu.PrefetchScalarGridSpec(
            num_scalar_prefetch=0,
            grid=grid,
            in_specs=[
                pl.BlockSpec((bc, h, w), lambda i, t: (i, 0, 0)),
                pl.BlockSpec((th_out, h), lambda i, t: (t, 0)),
                pl.BlockSpec((w, w_out), lambda i, t: (0, 0)),
            ],
            out_specs=pl.BlockSpec((bc, th_out, w_out), lambda i, t: (i, t, 0)),
        ),
        compiler_params=pltpu.CompilerParams(
            dimension_semantics=("parallel", "parallel"),
            vmem_limit_bytes=_VMEM_LIMIT_BYTES,
        ),
        cost_estimate=cost,
    )(x_flat, uh, uwt)
    return out.reshape(n, c, h_out, w_out)


class SemSegHRNetHeadPallas:
    """JAX/Pallas mirror of SemSegHRNetHead (inference forward)."""

    def __init__(self, *, num_classes: int, conv_dims: int, common_stride: int,
                 loss_weight: float = 1.0, ignore_value: int = -1,
                 balance_weight=(1.0, 0.4)):
        self.common_stride = common_stride
        self.loss_weight = loss_weight
        self.ignore_value = ignore_value
        self._num_classes = num_classes
        self.balance_weight = list(balance_weight)
        # Predictor = Conv2d(conv_dims, num_classes, 1x1), c2_msra_fill init.
        # Deterministic synthetic init (MSRA-style normal, bias=0).
        k = jax.random.PRNGKey(42)
        std = (2.0 / float(conv_dims)) ** 0.5
        self.predictor_w = std * jax.random.normal(
            k, (num_classes, conv_dims, 1, 1), jnp.float32)
        self.predictor_b = jnp.zeros((num_classes,), jnp.float32)
        # NOTE: like the PyTorch module's eval forward, the predictor is NOT
        # applied in forward(); it exists only because __init__ creates it.
        # TODO(synk): `layers()` references self.scale_heads which is never
        # defined in the reference __init__ (dead code) — not implemented.
        # TODO(synk): training-mode `losses()` (cross-entropy path) not implemented.

    def forward(self, features, targets=None, masks=None):
        x = features
        if isinstance(x, (list, tuple)) and len(x) == 2:
            x = x[1]
        x = bilinear_upsample_pallas(x, self.common_stride)
        return x, {}


if __name__ == "__main__":
    key = jax.random.PRNGKey(0)
    k1, k2, k3 = jax.random.split(key, 3)

    # ---- Primary check: lane-dense output path (W_out = 128) -------------
    B, C, H, W = 2, 4, 32, 32
    common_stride = 4
    feat_a = jax.random.normal(k1, (B, C, H, W), jnp.float32)
    feat_b = jax.random.normal(k2, (B, C, H, W), jnp.float32)

    head = SemSegHRNetHeadPallas(num_classes=C, conv_dims=8,
                                 common_stride=common_stride)
    out, extras = head.forward([feat_a, feat_b])
    out = jax.block_until_ready(out)

    uh32 = _bilinear_matrix(H, H * common_stride)
    uw32 = _bilinear_matrix(W, W * common_stride)
    ref = jnp.einsum("oh,nchw,pw->ncop", uh32, feat_b, uw32,
                     precision=lax.Precision.HIGHEST)

    assert out.shape == (B, C, H * common_stride, W * common_stride), out.shape
    assert out.dtype == feat_b.dtype
    assert extras == {}
    assert jnp.allclose(out, ref, atol=1e-3, rtol=1e-3), float(
        jnp.max(jnp.abs(out - ref)))

    # ---- Secondary check: small W_out (< 128 lanes) path ------------------
    H2, W2 = 16, 16
    feat_s = jax.random.normal(k3, (B, C, H2, W2), jnp.float32)
    out2 = jax.block_until_ready(bilinear_upsample_pallas(feat_s, common_stride))
    ref2 = jnp.einsum("oh,nchw,pw->ncop",
                      _bilinear_matrix(H2, H2 * common_stride), feat_s,
                      _bilinear_matrix(W2, W2 * common_stride),
                      precision=lax.Precision.HIGHEST)
    assert jnp.allclose(out2, ref2, atol=1e-3, rtol=1e-3), float(
        jnp.max(jnp.abs(out2 - ref2)))

    # ---- bf16 fast path (native MXU dtype), loose tolerance vs f32 ref ----
    out_bf, _ = head.forward([feat_a.astype(jnp.bfloat16),
                              feat_b.astype(jnp.bfloat16)])
    out_bf = jax.block_until_ready(out_bf)
    assert out_bf.dtype == jnp.bfloat16
    assert jnp.allclose(out_bf.astype(jnp.float32), ref, atol=1e-1, rtol=5e-2), float(
        jnp.max(jnp.abs(out_bf.astype(jnp.float32) - ref)))

    print("KERNEL_OK")
</pallas_src>

<mosaic_0001>
module attributes {stable_mosaic.version = 11 : i64} {
  func.func @_upsample_kernel_width_first(%arg0: i32, %arg1: i32, %arg2: memref<4x32x32xf32, #tpu.memory_space<vmem>>, %arg3: memref<128x32xf32, #tpu.memory_space<vmem>>, %arg4: memref<32x128xf32, #tpu.memory_space<vmem>>, %arg5: memref<4x128x128xf32, #tpu.memory_space<vmem>>) attributes {dimension_semantics = [#tpu.dimension_semantics<parallel>, #tpu.dimension_semantics<parallel>], iteration_bounds = array<i64: 2, 1>, scalar_prefetch = 0 : i64, scratch_operands = 0 : i64, tpu.core_type = #tpu.core_type<tc>, window_params = [{transform_indices = @transform_0, window_bounds = array<i64: 4, 32, 32>}, {transform_indices = @transform_1, window_bounds = array<i64: 128, 32>}, {pipeline_mode = #tpu.pipeline_mode<synchronous>, transform_indices = @transform_2, window_bounds = array<i64: 32, 128>}, {transform_indices = @transform_3, window_bounds = array<i64: 4, 128, 128>}]} {
    %c0 = arith.constant 0 : index
    %c0_0 = arith.constant 0 : index
    %c0_1 = arith.constant 0 : index
    %0 = vector.load %arg2[%c0, %c0_0, %c0_1] : memref<4x32x32xf32, #tpu.memory_space<vmem>>, vector<4x32x32xf32>
    %1 = vector.shape_cast %0 : vector<4x32x32xf32> to vector<128x32xf32>
    %c0_2 = arith.constant 0 : index
    %c0_3 = arith.constant 0 : index
    %2 = vector.load %arg4[%c0_2, %c0_3] : memref<32x128xf32, #tpu.memory_space<vmem>>, vector<32x128xf32>
    %cst = arith.constant dense<0.000000e+00> : vector<128x128xf32>
    %3 = tpu.matmul %1, %2, %cst {dimension_numbers = #tpu.dot_dimension_numbers<[1], [0], [0], [1], [0, 0, 1, 1], [], []>} : vector<128x32xf32>, vector<32x128xf32>, vector<128x128xf32> -> vector<128x128xf32>
    %4 = vector.shape_cast %3 : vector<128x128xf32> to vector<4x32x128xf32>
    %c0_4 = arith.constant 0 : index
    %c0_5 = arith.constant 0 : index
    %5 = vector.load %arg3[%c0_4, %c0_5] : memref<128x32xf32, #tpu.memory_space<vmem>>, vector<128x32xf32>
    %6 = vector.shape_cast %5 : vector<128x32xf32> to vector<1x128x32xf32>
    %7 = vector.shape_cast %6 : vector<1x128x32xf32> to vector<1x128x32xf32>
    %8 = vector.broadcast %7 : vector<1x128x32xf32> to vector<4x128x32xf32>
    "tpu.trace_start"() <{level = 10 : i32, message = "boh,bhw->bow"}> : () -> ()
    %cst_6 = arith.constant dense<0.000000e+00> : vector<4x128x128xf32>
    %9 = tpu.matmul %8, %4, %cst_6 {dimension_numbers = #tpu.dot_dimension_numbers<[2], [1], [1], [2], [0, 0, 0, 1, 1, 2], [0], [0]>} : vector<4x128x32xf32>, vector<4x32x128xf32>, vector<4x128x128xf32> -> vector<4x128x128xf32>
    "tpu.trace_stop"() : () -> ()
    %c0_7 = arith.constant 0 : index
    %c0_8 = arith.constant 0 : index
    %c0_9 = arith.constant 0 : index
    %10 = vector.load %arg5[%c0_7, %c0_8, %c0_9] : memref<4x128x128xf32, #tpu.memory_space<vmem>>, vector<4x128x128xf32>
    tpu.vector_store %arg5[%c0_7, %c0_8, %c0_9], %9 {strides = array<i32>} : memref<4x128x128xf32, #tpu.memory_space<vmem>>, vector<4x128x128xf32>,
    return
  }
  func.func @transform_0(%arg0: i32, %arg1: i32) -> (i32, i32, i32) {
    %c0_i32 = arith.constant 0 : i32
    %c0_i32_0 = arith.constant 0 : i32
    %c0_i32_1 = arith.constant 0 : i32
    return %arg0, %c0_i32, %c0_i32_0 : i32, i32, i32
  }
  func.func @transform_1(%arg0: i32, %arg1: i32) -> (i32, i32) {
    %c0_i32 = arith.constant 0 : i32
    %c0_i32_0 = arith.constant 0 : i32
    return %arg1, %c0_i32 : i32, i32
  }
  func.func @transform_2(%arg0: i32, %arg1: i32) -> (i32, i32) {
    %c0_i32 = arith.constant 0 : i32
    %c0_i32_0 = arith.constant 0 : i32
    %c0_i32_1 = arith.constant 0 : i32
    return %c0_i32, %c0_i32_0 : i32, i32
  }
  func.func @transform_3(%arg0: i32, %arg1: i32) -> (i32, i32, i32) {
    %c0_i32 = arith.constant 0 : i32
    %c0_i32_0 = arith.constant 0 : i32
    return %arg0, %arg1, %c0_i32 : i32, i32, i32
  }
}

</mosaic_0001>

<llo_original>
// kernel: tpu_custom_call.1
$region0: #{tpu_custom_call.1}
  #allocation0 [shape = 'u32[]', space=smem, size = 0x4, offset = 0x4, fixed_abs, tag = 'smem constant byte address 0x4 - core index']
  #allocation1 [shape = 'u32[144,128]{1,0:T(1,128)}', space=vmem, size = 0x12000, scoped, tag = 'internal scratch']
  %s0 = inlined_call_operand.hbm [shape: f32[8,32,32], index: 0, kind: input, shape index: {}]
  %s1 = inlined_call_operand.vmem [shape: f32[128,32], index: 1, kind: input, shape index: {}]
  %s2 = inlined_call_operand.vmem [shape: f32[32,128], index: 2, kind: input, shape index: {}]
  %s3 = inlined_call_operand.hbm [shape: f32[8,128,128], index: 3, kind: output, shape index: {}]
  %s4 = sld [smem:[#allocation0]]
  $region49: #{tpu_custom_call.1} parent=0
    _
  %s6 = ssub.s32 1, %s4
  %s7 = scalar_select 0, %s6, %s4
  $region1: #{tpu_custom_call.1} parent=0
    #allocation2 [shape = 'u8[131072]{0}', space=vmem, size = 0x20000, scoped, tag = 'input window, operand 0']
    #allocation3 [shape = 's32[2]{0}', space=sflag, size = 0x8, scoped, tag = 'scoped memory for tpu_custom_call.1']
    #allocation4 [shape = 's32[2]{0}', space=sflag, size = 0x8, scoped, tag = 'scoped memory for tpu_custom_call.1']
    #allocation5 [shape = 'u8[524288]{0}', space=vmem, size = 0x80000, scoped, tag = 'output window, operand 0']
    %8 = vsyncpa [#allocation3], 0
    %s9 = scalar_lea.sflag [#allocation3], 1
    %10 = vsyncpa %s9, 0
    %11 = vsyncpa [#allocation4], 0
    %s12 = scalar_lea.sflag [#allocation4], 1
    %13 = vsyncpa %s12, 0
    loop: start=0, step=1, limit=4
    $region2: #{tpu_custom_call.1} parent=1 // loop_pre_header
      _
    $region3: #{tpu_custom_call.1} parent=1 // loop_header
      %s15 = sphi 0, %s19
      %p16 = scmp.ge.s32.totalorder %s15, 4
      %s22 = sphi 0, %s34
      %s23 = sphi 0, %s30
      %s24 = sphi 0, %s22
      %s25 = sphi 0, %s23
      %s26 = sphi 0, %s24
      %s27 = sphi 0, %s25
      %s37 = sphi 0, %s39
      %s40 = sphi 0, %s37
      %s41 = sphi 0, %s40
      %s57 = sphi 0, %s41
      %s63 = sphi 0, %s65
      %s66 = sphi 0, %s63
      %s67 = sphi 0, %s66
      %s83 = sphi 0, %s67
      %s87 = sphi 0, %s87
      %s89 = sphi 0, %s87
      %s90 = sphi 0, %s89
      %s104 = sphi 0, %s90
      %s112 = sphi 0, %s114
      %s115 = sphi 0, %s112
      %s116 = sphi 0, %s115
      %s132 = sphi 0, %s116
    $region4: #{tpu_custom_call.1} parent=1 // loop_header_branch
      %18 = sbr.rel (%p16) target = $region8
    $region5: #{tpu_custom_call.1} parent=1 // loop_body
      %s20 = ssub.s32 %s15, 1
      %s21 = ssub.s32 %s15, 2
      %s28 = sadd.s32 1, %s23
      %p29 = scmp.ge.s32.totalorder %s28, 1
      %s30 = scalar_select %p29, 0, %s28
      %s31 = sadd.s32 1, %s22
      %s32 = scalar_select %p29, %s31, %s22
      %p33 = scmp.ge.s32.totalorder %s32, 2
      %s34 = scalar_select %p33, 0, %s32
      %s35 = ssub.s32 %s22, %s34
      %p36 = scmp.eq.s32.totalorder %s35, 0
      %s38 = sadd.s32 %s37, 1
      %s39 = scalar_select %p36, %s37, %s38
      %p42 = pneg %p36
      %p43 = scmp.eq.s32.totalorder %s15, 1
      %p44 = por %p42, %p43
      %p45 = scmp.ne.s32.totalorder %s37, %s40
      %p46 = scmp.eq.s32.totalorder %s15, 0
      %p47 = por %p45, %p46
      %p48 = scmp.ne.s32.totalorder %s37, %s40
      %p49 = scmp.eq.s32.totalorder %s20, 1
      %p50 = por %p48, %p49
      %p51 = scmp.ne.s32.totalorder %s40, %s41
      %p52 = scmp.eq.s32.totalorder %s20, 0
      %p53 = por %p51, %p52
      %p54 = scmp.ne.s32.totalorder %s40, %s41
      %p55 = scmp.eq.s32.totalorder %s21, 1
      %p56 = por %p54, %p55
      %p58 = scmp.ne.s32.totalorder %s41, %s57
      %p59 = scmp.eq.s32.totalorder %s21, 0
      %p60 = por %p58, %p59
      %s61 = ssub.s32 %s23, %s30
      %p62 = scmp.eq.s32.totalorder %s61, 0
      %s64 = sadd.s32 %s63, 1
      %s65 = scalar_select %p62, %s63, %s64
      %p68 = pneg %p62
      %p69 = scmp.eq.s32.totalorder %s15, 1
      %p70 = por %p68, %p69
      %p71 = scmp.ne.s32.totalorder %s63, %s66
      %p72 = scmp.eq.s32.totalorder %s15, 0
      %p73 = por %p71, %p72
      %p74 = scmp.ne.s32.totalorder %s63, %s66
      %p75 = scmp.eq.s32.totalorder %s20, 1
      %p76 = por %p74, %p75
      %p77 = scmp.ne.s32.totalorder %s66, %s67
      %p78 = scmp.eq.s32.totalorder %s20, 0
      %p79 = por %p77, %p78
      %p80 = scmp.ne.s32.totalorder %s66, %s67
      %p81 = scmp.eq.s32.totalorder %s21, 1
      %p82 = por %p80, %p81
      %p84 = scmp.ne.s32.totalorder %s67, %s83
      %p85 = scmp.eq.s32.totalorder %s21, 0
      %p86 = por %p84, %p85
      %s88 = sadd.s32 %s87, 1
      %p91 = scmp.eq.s32.totalorder %s15, 1
      %p92 = scmp.ne.s32.totalorder %s87, %s89
      %p93 = scmp.eq.s32.totalorder %s15, 0
      %p94 = por %p92, %p93
      %p95 = scmp.ne.s32.totalorder %s87, %s89
      %p96 = scmp.eq.s32.totalorder %s20, 1
      %p97 = por %p95, %p96
      %p98 = scmp.ne.s32.totalorder %s89, %s90
      %p99 = scmp.eq.s32.totalorder %s20, 0
      %p100 = por %p98, %p99
      %p101 = scmp.ne.s32.totalorder %s89, %s90
      %p102 = scmp.eq.s32.totalorder %s21, 1
      %p103 = por %p101, %p102
      %p105 = scmp.ne.s32.totalorder %s90, %s104
      %p106 = scmp.eq.s32.totalorder %s21, 0
      %p107 = por %p105, %p106
      %s108 = ssub.s32 %s22, %s34
      %s109 = ssub.s32 %s23, %s30
      %s110 = sor.u32 %s108, %s109
      %p111 = scmp.eq.s32.totalorder %s110, 0
      %s113 = sadd.s32 %s112, 1
      %s114 = scalar_select %p111, %s112, %s113
      %p117 = pneg %p111
      %p118 = scmp.eq.s32.totalorder %s15, 1
      %p119 = por %p117, %p118
      %p120 = scmp.ne.s32.totalorder %s112, %s115
      %p121 = scmp.eq.s32.totalorder %s15, 0
      %p122 = por %p120, %p121
      %p123 = scmp.ne.s32.totalorder %s112, %s115
      %p124 = scmp.eq.s32.totalorder %s20, 1
      %p125 = por %p123, %p124
      %p126 = scmp.ne.s32.totalorder %s115, %s116
      %p127 = scmp.eq.s32.totalorder %s20, 0
      %p128 = por %p126, %p127
      %p129 = scmp.ne.s32.totalorder %s115, %s116
      %p130 = scmp.eq.s32.totalorder %s21, 1
      %p131 = por %p129, %p130
      %p133 = scmp.ne.s32.totalorder %s116, %s132
      %p134 = scmp.eq.s32.totalorder %s21, 0
      %p135 = por %p133, %p134
      %p136 = scmp.le.s32.totalorder 1, %s15
      %p137 = scmp.lt.s32.totalorder %s15, 3
      %p138 = pnand %p136, %p137
      %p139 = pneg %p138
      // Predicated region
      $region9: #{tpu_custom_call.1} parent=5 // pred_check
        _
      $region10: #{tpu_custom_call.1} parent=5 // pred_check_branch
        %141 = sbr.rel (%p138) target = $region12
      $region11: #{tpu_custom_call.1} parent=5 // pred_region
        %s142 = ssub.s32 %s15, 1
        // Predicated region
        $region13: #{tpu_custom_call.1} parent=11 // pred_check
          %p143 = pneg %p79
        $region14: #{tpu_custom_call.1} parent=11 // pred_check_branch
          %145 = sbr.rel (%p143) target = $region16
        $region15: #{tpu_custom_call.1} parent=11 // pred_region
          %s146 = smul.u32 16, %s25
          %p147 = scmp.lt.s32.totalorder %s146, 15
          %s148 = scalar_select %p147, %s146, 15
          %s149 = smul.addr %s148, 8
          %s150 = scalar_lea.vmem %s1, %s149
          %s151 = smul.u32 16, %s25
        $region16: #{tpu_custom_call.1} parent=11 // pred_fallthru
          _
        // Predicated region
        $region17: #{tpu_custom_call.1} parent=11 // pred_check
          %p152 = pneg %p100
        $region18: #{tpu_custom_call.1} parent=11 // pred_check_branch
          %154 = sbr.rel (%p152) target = $region20
        $region19: #{tpu_custom_call.1} parent=11 // pred_region
          _
        $region20: #{tpu_custom_call.1} parent=11 // pred_fallthru
          _
      $region12: #{tpu_custom_call.1} parent=5 // pred_fallthru
        _
      %p155 = scmp.lt.s32.totalorder %s15, 2
      // Predicated region
      $region21: #{tpu_custom_call.1} parent=5 // pred_check
        %p156 = pneg %p155
      $region22: #{tpu_custom_call.1} parent=5 // pred_check_branch
        %158 = sbr.rel (%p156) target = $region24
      $region23: #{tpu_custom_call.1} parent=5 // pred_region
        // Predicated region
        $region25: #{tpu_custom_call.1} parent=23 // pred_check
          %p159 = pneg %p47
        $region26: #{tpu_custom_call.1} parent=23 // pred_check_branch
          %161 = sbr.rel (%p159) target = $region28
        $region27: #{tpu_custom_call.1} parent=23 // pred_region
          %s162 = sand.u32 %s37, 1
          %s163 = scalar_lea.sflag [#allocation3], %s162
          %s164 = sand.u32 %s37, 1
          %s165 = smul.addr %s164, 128
          %s166 = scalar_lea.vmem [#allocation2], %s165
          %s167 = smul.u32 4, %s22
          %s169 = ssub.s32 2048, 2048
          %170 = vsyncadd %s163, %s169
          %s171 = smul.addr %s167, 4
          %s172 = smul.addr %s171, 128
          %s173 = scalar_lea.hbm %s0, %s172
          %s174 = sshll.u32 %s166, 4
          %s175 = int_to_ptr.vmem [resolvable:$true] %s174
          %180 = dma.hbm_to_vmem [thread:$0]  %s173, 2048, %s175, %s163, 128, 128, 8
        $region28: #{tpu_custom_call.1} parent=23 // pred_fallthru
          _
      $region24: #{tpu_custom_call.1} parent=5 // pred_fallthru
        _
      %p181 = scmp.le.s32.totalorder 1, %s15
      %p182 = scmp.lt.s32.totalorder %s15, 3
      %p183 = pnand %p181, %p182
      %p184 = pneg %p183
      // Predicated region
      $region29: #{tpu_custom_call.1} parent=5 // pred_check
        _
      $region30: #{tpu_custom_call.1} parent=5 // pred_check_branch
        %186 = sbr.rel (%p183) target = $region32
      $region31: #{tpu_custom_call.1} parent=5 // pred_region
        %s187 = ssub.s32 %s15, 1
        %s188 = sand.u32 %s40, 1
        %s189 = scalar_lea.sflag [#allocation3], %s188
        %s190 = sand.u32 %s40, 1
        %s191 = smul.addr %s190, 128
        %s192 = scalar_lea.vmem [#allocation2], %s191
        // Predicated region
        $region33: #{tpu_custom_call.1} parent=31 // pred_check
          %p193 = pneg %p53
        $region34: #{tpu_custom_call.1} parent=31 // pred_check_branch
          %195 = sbr.rel (%p193) target = $region36
        $region35: #{tpu_custom_call.1} parent=31 // pred_region
          %196 = dma.done %s189, 2048
        $region36: #{tpu_custom_call.1} parent=31 // pred_fallthru
          _
        %s197 = sand.u32 %s40, 1
        %s198 = scalar_lea.sflag [#allocation3], %s197
        %s199 = sand.u32 %s40, 1
        %s200 = smul.addr %s199, 128
        %s201 = scalar_lea.vmem [#allocation2], %s200
        %p202 = pneg %p53
        %p203 = pneg %p50
        %s204 = smul.u32 16, %s25
        %p205 = scmp.lt.s32.totalorder %s204, 15
        %s206 = scalar_select %p205, %s204, 15
        %s207 = smul.addr %s206, 8
        %s208 = scalar_lea.vmem %s1, %s207
        %p209 = pneg %p79
        %p210 = pneg %p76
        %p211 = pneg %p100
        %p212 = pneg %p97
        %p213 = pneg %p128
        %p214 = pneg %p125
        %s215 = sand.u32 %s115, 1
        %s216 = scalar_lea.sflag [#allocation4], %s215
        %s217 = sand.u32 %s115, 1
        %s218 = smul.addr %s217, 512
        %s219 = scalar_lea.vmem [#allocation5], %s218
        %s220 = smul.u32 4, %s24
        %s221 = smul.u32 16, %s25
        %p222 = scmp.lt.s32.totalorder %s221, 15
        %s223 = scalar_select %p222, %s221, 15
        %s224 = smul.addr %s223, 8
        %s225 = scalar_lea.vmem %s1, %s224
        %s226 = smul.u32 16, %s25
        %s227 = smul.u32 4, %s24
        %s228 = smul.u32 16, %s25
        %v229 = vld [vmem:[%s192] sm:$0xff]
        %v230 = vld [vmem:[%s192 + $0x8] sm:$0xff]
        %v231 = vld [vmem:[%s192 + $0x10] sm:$0xff]
        %v232 = vld [vmem:[%s192 + $0x18] sm:$0xff]
        %v233 = vld [vmem:[%s192 + $0x20] sm:$0xff]
        %v234 = vld [vmem:[%s192 + $0x28] sm:$0xff]
        %v235 = vld [vmem:[%s192 + $0x30] sm:$0xff]
        %v236 = vld [vmem:[%s192 + $0x38] sm:$0xff]
        %v237 = vld [vmem:[%s192 + $0x40] sm:$0xff]
        %v238 = vld [vmem:[%s192 + $0x48] sm:$0xff]
        %v239 = vld [vmem:[%s192 + $0x50] sm:$0xff]
        %v240 = vld [vmem:[%s192 + $0x58] sm:$0xff]
        %v241 = vld [vmem:[%s192 + $0x60] sm:$0xff]
        %v242 = vld [vmem:[%s192 + $0x68] sm:$0xff]
        %v243 = vld [vmem:[%s192 + $0x70] sm:$0xff]
        %v244 = vld [vmem:[%s192 + $0x78] sm:$0xff]
        %v245 = vld [vmem:[%s2] sm:$0xff]
        %v246 = vld [vmem:[%s2 + $0x8] sm:$0xff]
        %v247 = vld [vmem:[%s2 + $0x10] sm:$0xff]
        %v248 = vld [vmem:[%s2 + $0x18] sm:$0xff]
        %vm249 = vcmask 261120
        %v251 = vsel %vm249, %v229, 0
        %v254 = vsel %vm249, %v230, 0
        %v257 = vsel %vm249, %v231, 0
        %v260 = vsel %vm249, %v232, 0
        %v263 = vsel %vm249, %v233, 0
        %v266 = vsel %vm249, %v234, 0
        %v269 = vsel %vm249, %v235, 0
        %v272 = vsel %vm249, %v236, 0
        %v275 = vsel %vm249, %v237, 0
        %v278 = vsel %vm249, %v238, 0
        %v281 = vsel %vm249, %v239, 0
        %v284 = vsel %vm249, %v240, 0
        %v287 = vsel %vm249, %v241, 0
        %v290 = vsel %vm249, %v242, 0
        %v293 = vsel %vm249, %v243, 0
        %v296 = vsel %vm249, %v244, 0
        %298 = vmatprep.subr.mxu0 0.0
        %299 = vmatpush1.msra.mxu0 0.0
        %300 = vmatprep.subr.mxu0 0.0
        %301 = vmatpush1.msra.mxu0 0.0
        %302 = vmatprep.subr.mxu0 0.0
        %303 = vmatpush1.msra.mxu0 0.0
        %304 = vmatprep.subr.mxu0 0.0
        %305 = vmatpush1.msra.mxu0 0.0
        %306 = vmatprep.subr.mxu0 0.0
        %307 = vmatpush1.msra.mxu0 0.0
        %308 = vmatprep.subr.mxu0 0.0
        %309 = vmatpush1.msra.mxu0 0.0
        %310 = vmatprep.subr.mxu0 0.0
        %311 = vmatpush1.msra.mxu0 0.0
        %312 = vmatprep.subr.mxu0 0.0
        %313 = vmatpush1.msra.mxu0 0.0
        %314 = vmatprep.subr.mxu0 0.0
        %315 = vmatpush1.msra.mxu0 0.0
        %316 = vmatprep.subr.mxu0 0.0
        %317 = vmatpush1.msra.mxu0 0.0
        %318 = vmatprep.subr.mxu0 0.0
        %319 = vmatpush1.msra.mxu0 0.0
        %320 = vmatprep.subr.mxu0 0.0
        %321 = vmatpush1.msra.mxu0 0.0
        %322 = vmatprep.subr.mxu0 0.0
        %323 = vmatpush1.msra.mxu0 %v248
        %324 = vmatprep.subr.mxu0 0.0
        %325 = vmatpush1.msra.mxu0 %v247
        %326 = vmatprep.subr.mxu0 0.0
        %327 = vmatpush1.msra.mxu0 %v246
        %328 = vmatprep.subr.mxu0 0.0
        %329 = vmatpush1.msra.mxu0 %v245
        %330 = vmatprep.subr.mxu0 0.0
        %331 = vmatpush2.msra.mxu0 0.0
        %332 = vmatprep.subr.mxu0 0.0
        %333 = vmatpush2.msra.mxu0 0.0
        %334 = vmatprep.subr.mxu0 0.0
        %335 = vmatpush2.msra.mxu0 0.0
        %336 = vmatprep.subr.mxu0 0.0
        %337 = vmatpush2.msra.mxu0 0.0
        %338 = vmatprep.subr.mxu0 0.0
        %339 = vmatpush2.msra.mxu0 0.0
        %340 = vmatprep.subr.mxu0 0.0
        %341 = vmatpush2.msra.mxu0 0.0
        %342 = vmatprep.subr.mxu0 0.0
        %343 = vmatpush2.msra.mxu0 0.0
        %344 = vmatprep.subr.mxu0 0.0
        %345 = vmatpush2.msra.mxu0 0.0
        %346 = vmatprep.subr.mxu0 0.0
        %347 = vmatpush2.msra.mxu0 0.0
        %348 = vmatprep.subr.mxu0 0.0
        %349 = vmatpush2.msra.mxu0 0.0
        %350 = vmatprep.subr.mxu0 0.0
        %351 = vmatpush2.msra.mxu0 0.0
        %352 = vmatprep.subr.mxu0 0.0
        %353 = vmatpush2.msra.mxu0 0.0
        %354 = vmatprep.subr.mxu0 0.0
        %355 = vmatpush2.msra.mxu0 0.0
        %356 = vmatprep.subr.mxu0 0.0
        %357 = vmatpush2.msra.mxu0 0.0
        %358 = vmatprep.subr.mxu0 0.0
        %359 = vmatpush2.msra.mxu0 0.0
        %360 = vmatprep.subr.mxu0 0.0
        %361 = vmatpush2.msra.mxu0 0.0
        %362 = vmatprep.mubr.f32.mxu0 0.0
        %363 = vmatmul.mubr.f32.gmra.mxu0 %v251
        %v364 = vpop.f32.mrf.mxu0
        %v365 = vadd.f32 0.0, %v364
        %v366 = vpop.f32.mrf.mxu0
        %367 = vmatprep.mubr.f32.mxu0 0.0
        %368 = vmatmul.mubr.f32.gmra.mxu0 %v254
        %v369 = vpop.f32.mrf.mxu0
        %v370 = vadd.f32 0.0, %v369
        %v371 = vpop.f32.mrf.mxu0
        %372 = vmatprep.mubr.f32.mxu0 0.0
        %373 = vmatmul.mubr.f32.gmra.mxu0 %v257
        %v374 = vpop.f32.mrf.mxu0
        %v375 = vadd.f32 0.0, %v374
        %v376 = vpop.f32.mrf.mxu0
        %377 = vmatprep.mubr.f32.mxu0 0.0
        %378 = vmatmul.mubr.f32.gmra.mxu0 %v260
        %v379 = vpop.f32.mrf.mxu0
        %v380 = vadd.f32 0.0, %v379
        %v381 = vpop.f32.mrf.mxu0
        %382 = vmatprep.mubr.f32.mxu0 0.0
        %383 = vmatmul.mubr.f32.gmra.mxu0 %v263
        %v384 = vpop.f32.mrf.mxu0
        %v385 = vadd.f32 0.0, %v384
        %v386 = vpop.f32.mrf.mxu0
        %387 = vmatprep.mubr.f32.mxu0 0.0
        %388 = vmatmul.mubr.f32.gmra.mxu0 %v266
        %v389 = vpop.f32.mrf.mxu0
        %v390 = vadd.f32 0.0, %v389
        %v391 = vpop.f32.mrf.mxu0
        %392 = vmatprep.mubr.f32.mxu0 0.0
        %393 = vmatmul.mubr.f32.gmra.mxu0 %v269
        %v394 = vpop.f32.mrf.mxu0
        %v395 = vadd.f32 0.0, %v394
        %v396 = vpop.f32.mrf.mxu0
        %397 = vmatprep.mubr.f32.mxu0 0.0
        %398 = vmatmul.mubr.f32.gmra.mxu0 %v272
        %v399 = vpop.f32.mrf.mxu0
        %v400 = vadd.f32 0.0, %v399
        %v401 = vpop.f32.mrf.mxu0
        %402 = vmatprep.mubr.f32.mxu0 0.0
        %403 = vmatmul.mubr.f32.gmra.mxu0 %v275
        %v404 = vpop.f32.mrf.mxu0
        %v405 = vadd.f32 0.0, %v404
        %v406 = vpop.f32.mrf.mxu0
        %407 = vmatprep.mubr.f32.mxu0 0.0
        %408 = vmatmul.mubr.f32.gmra.mxu0 %v278
        %v409 = vpop.f32.mrf.mxu0
        %v410 = vadd.f32 0.0, %v409
        %v411 = vpop.f32.mrf.mxu0
        %412 = vmatprep.mubr.f32.mxu0 0.0
        %413 = vmatmul.mubr.f32.gmra.mxu0 %v281
        %v414 = vpop.f32.mrf.mxu0
        %v415 = vadd.f32 0.0, %v414
        %v416 = vpop.f32.mrf.mxu0
        %417 = vmatprep.mubr.f32.mxu0 0.0
        %418 = vmatmul.mubr.f32.gmra.mxu0 %v284
        %v419 = vpop.f32.mrf.mxu0
        %v420 = vadd.f32 0.0, %v419
        %v421 = vpop.f32.mrf.mxu0
        %422 = vmatprep.mubr.f32.mxu0 0.0
        %423 = vmatmul.mubr.f32.gmra.mxu0 %v287
        %v424 = vpop.f32.mrf.mxu0
        %v425 = vadd.f32 0.0, %v424
        %v426 = vpop.f32.mrf.mxu0
        %427 = vmatprep.mubr.f32.mxu0 0.0
        %428 = vmatmul.mubr.f32.gmra.mxu0 %v290
        %v429 = vpop.f32.mrf.mxu0
        %v430 = vadd.f32 0.0, %v429
        %v431 = vpop.f32.mrf.mxu0
        %432 = vmatprep.mubr.f32.mxu0 0.0
        %433 = vmatmul.mubr.f32.gmra.mxu0 %v293
        %v434 = vpop.f32.mrf.mxu0
        %v435 = vadd.f32 0.0, %v434
        %v436 = vpop.f32.mrf.mxu0
        %437 = vmatprep.mubr.f32.mxu0 0.0
        %438 = vmatmul.mubr.f32.gmra.mxu0 %v296
        %v439 = vpop.f32.mrf.mxu0
        %v440 = vadd.f32 0.0, %v439
        %v441 = vpop.f32.mrf.mxu0
        %442 = vdwg.mxu0
        %v443 = vld [vmem:[%s225] sm:$0xff]
        %v444 = vld [vmem:[%s225 + $0x8] sm:$0xff]
        %v445 = vld [vmem:[%s225 + $0x10] sm:$0xff]
        %v446 = vld [vmem:[%s225 + $0x18] sm:$0xff]
        %v447 = vld [vmem:[%s225 + $0x20] sm:$0xff]
        %v448 = vld [vmem:[%s225 + $0x28] sm:$0xff]
        %v449 = vld [vmem:[%s225 + $0x30] sm:$0xff]
        %v450 = vld [vmem:[%s225 + $0x38] sm:$0xff]
        %v451 = vld [vmem:[%s225 + $0x40] sm:$0xff]
        %v452 = vld [vmem:[%s225 + $0x48] sm:$0xff]
        %v453 = vld [vmem:[%s225 + $0x50] sm:$0xff]
        %v454 = vld [vmem:[%s225 + $0x58] sm:$0xff]
        %v455 = vld [vmem:[%s225 + $0x60] sm:$0xff]
        %v456 = vld [vmem:[%s225 + $0x68] sm:$0xff]
        %v457 = vld [vmem:[%s225 + $0x70] sm:$0xff]
        %v458 = vld [vmem:[%s225 + $0x78] sm:$0xff]
        %v460 = vsel %vm249, %v443, 0
        %v463 = vsel %vm249, %v444, 0
        %v466 = vsel %vm249, %v445, 0
        %v469 = vsel %vm249, %v446, 0
        %v472 = vsel %vm249, %v447, 0
        %v475 = vsel %vm249, %v448, 0
        %v478 = vsel %vm249, %v449, 0
        %v481 = vsel %vm249, %v450, 0
        %v484 = vsel %vm249, %v451, 0
        %v487 = vsel %vm249, %v452, 0
        %v490 = vsel %vm249, %v453, 0
        %v493 = vsel %vm249, %v454, 0
        %v496 = vsel %vm249, %v455, 0
        %v499 = vsel %vm249, %v456, 0
        %v502 = vsel %vm249, %v457, 0
        %v505 = vsel %vm249, %v458, 0
        %507 = vmatprep.subr.mxu0 0.0
        %508 = vmatpush1.msra.mxu0 0.0
        %509 = vmatprep.subr.mxu0 0.0
        %510 = vmatpush1.msra.mxu0 0.0
        %511 = vmatprep.subr.mxu0 0.0
        %512 = vmatpush1.msra.mxu0 0.0
        %513 = vmatprep.subr.mxu0 0.0
        %514 = vmatpush1.msra.mxu0 0.0
        %515 = vmatprep.subr.mxu0 0.0
        %516 = vmatpush1.msra.mxu0 0.0
        %517 = vmatprep.subr.mxu0 0.0
        %518 = vmatpush1.msra.mxu0 0.0
        %519 = vmatprep.subr.mxu0 0.0
        %520 = vmatpush1.msra.mxu0 0.0
        %521 = vmatprep.subr.mxu0 0.0
        %522 = vmatpush1.msra.mxu0 0.0
        %523 = vmatprep.subr.mxu0 0.0
        %524 = vmatpush1.msra.mxu0 0.0
        %525 = vmatprep.subr.mxu0 0.0
        %526 = vmatpush1.msra.mxu0 0.0
        %527 = vmatprep.subr.mxu0 0.0
        %528 = vmatpush1.msra.mxu0 0.0
        %529 = vmatprep.subr.mxu0 0.0
        %530 = vmatpush1.msra.mxu0 0.0
        %531 = vmatprep.subr.mxu0 0.0
        %532 = vmatpush1.msra.mxu0 %v380
        %533 = vmatprep.subr.mxu0 0.0
        %534 = vmatpush1.msra.mxu0 %v375
        %535 = vmatprep.subr.mxu0 0.0
        %536 = vmatpush1.msra.mxu0 %v370
        %537 = vmatprep.subr.mxu0 0.0
        %538 = vmatpush1.msra.mxu0 %v365
        %539 = vmatprep.subr.mxu0 0.0
        %540 = vmatpush2.msra.mxu0 0.0
        %541 = vmatprep.subr.mxu0 0.0
        %542 = vmatpush2.msra.mxu0 0.0
        %543 = vmatprep.subr.mxu0 0.0
        %544 = vmatpush2.msra.mxu0 0.0
        %545 = vmatprep.subr.mxu0 0.0
        %546 = vmatpush2.msra.mxu0 0.0
        %547 = vmatprep.subr.mxu0 0.0
        %548 = vmatpush2.msra.mxu0 0.0
        %549 = vmatprep.subr.mxu0 0.0
        %550 = vmatpush2.msra.mxu0 0.0
        %551 = vmatprep.subr.mxu0 0.0
        %552 = vmatpush2.msra.mxu0 0.0
        %553 = vmatprep.subr.mxu0 0.0
        %554 = vmatpush2.msra.mxu0 0.0
        %555 = vmatprep.subr.mxu0 0.0
        %556 = vmatpush2.msra.mxu0 0.0
        %557 = vmatprep.subr.mxu0 0.0
        %558 = vmatpush2.msra.mxu0 0.0
        %559 = vmatprep.subr.mxu0 0.0
        %560 = vmatpush2.msra.mxu0 0.0
        %561 = vmatprep.subr.mxu0 0.0
        %562 = vmatpush2.msra.mxu0 0.0
        %563 = vmatprep.subr.mxu0 0.0
        %564 = vmatpush2.msra.mxu0 0.0
        %565 = vmatprep.subr.mxu0 0.0
        %566 = vmatpush2.msra.mxu0 0.0
        %567 = vmatprep.subr.mxu0 0.0
        %568 = vmatpush2.msra.mxu0 0.0
        %569 = vmatprep.subr.mxu0 0.0
        %570 = vmatpush2.msra.mxu0 0.0
        %571 = vmatprep.mubr.f32.mxu0 0.0
        %572 = vmatmul.mubr.f32.gmra.mxu0 %v460
        %v573 = vpop.f32.mrf.mxu0
        %v574 = vadd.f32 0.0, %v573
        %v575 = vpop.f32.mrf.mxu0
        %576 = vmatprep.mubr.f32.mxu0 0.0
        %577 = vmatmul.mubr.f32.gmra.mxu0 %v463
        %v578 = vpop.f32.mrf.mxu0
        %v579 = vadd.f32 0.0, %v578
        %v580 = vpop.f32.mrf.mxu0
        %581 = vmatprep.mubr.f32.mxu0 0.0
        %582 = vmatmul.mubr.f32.gmra.mxu0 %v466
        %v583 = vpop.f32.mrf.mxu0
        %v584 = vadd.f32 0.0, %v583
        %v585 = vpop.f32.mrf.mxu0
        %586 = vmatprep.mubr.f32.mxu0 0.0
        %587 = vmatmul.mubr.f32.gmra.mxu0 %v469
        %v588 = vpop.f32.mrf.mxu0
        %v589 = vadd.f32 0.0, %v588
        %v590 = vpop.f32.mrf.mxu0
        %591 = vmatprep.mubr.f32.mxu0 0.0
        %592 = vmatmul.mubr.f32.gmra.mxu0 %v472
        %v593 = vpop.f32.mrf.mxu0
        %v594 = vadd.f32 0.0, %v593
        %v595 = vpop.f32.mrf.mxu0
        %596 = vmatprep.mubr.f32.mxu0 0.0
        %597 = vmatmul.mubr.f32.gmra.mxu0 %v475
        %v598 = vpop.f32.mrf.mxu0
        %v599 = vadd.f32 0.0, %v598
        %v600 = vpop.f32.mrf.mxu0
        %601 = vmatprep.mubr.f32.mxu0 0.0
        %602 = vmatmul.mubr.f32.gmra.mxu0 %v478
        %v603 = vpop.f32.mrf.mxu0
        %v604 = vadd.f32 0.0, %v603
        %v605 = vpop.f32.mrf.mxu0
        %606 = vmatprep.mubr.f32.mxu0 0.0
        %607 = vmatmul.mubr.f32.gmra.mxu0 %v481
        %v608 = vpop.f32.mrf.mxu0
        %v609 = vadd.f32 0.0, %v608
        %v610 = vpop.f32.mrf.mxu0
        %611 = vmatprep.mubr.f32.mxu0 0.0
        %612 = vmatmul.mubr.f32.gmra.mxu0 %v484
        %v613 = vpop.f32.mrf.mxu0
        %v614 = vadd.f32 0.0, %v613
        %v615 = vpop.f32.mrf.mxu0
        %616 = vmatprep.mubr.f32.mxu0 0.0
        %617 = vmatmul.mubr.f32.gmra.mxu0 %v487
        %v618 = vpop.f32.mrf.mxu0
        %v619 = vadd.f32 0.0, %v618
        %v620 = vpop.f32.mrf.mxu0
        %621 = vmatprep.mubr.f32.mxu0 0.0
        %622 = vmatmul.mubr.f32.gmra.mxu0 %v490
        %v623 = vpop.f32.mrf.mxu0
        %v624 = vadd.f32 0.0, %v623
        %v625 = vpop.f32.mrf.mxu0
        %626 = vmatprep.mubr.f32.mxu0 0.0
        %627 = vmatmul.mubr.f32.gmra.mxu0 %v493
        %v628 = vpop.f32.mrf.mxu0
        %v629 = vadd.f32 0.0, %v628
        %v630 = vpop.f32.mrf.mxu0
        %631 = vmatprep.mubr.f32.mxu0 0.0
        %632 = vmatmul.mubr.f32.gmra.mxu0 %v496
        %v633 = vpop.f32.mrf.mxu0
        %v634 = vadd.f32 0.0, %v633
        %v635 = vpop.f32.mrf.mxu0
        %636 = vmatprep.mubr.f32.mxu0 0.0
        %637 = vmatmul.mubr.f32.gmra.mxu0 %v499
        %v638 = vpop.f32.mrf.mxu0
        %v639 = vadd.f32 0.0, %v638
        %v640 = vpop.f32.mrf.mxu0
        %641 = vmatprep.mubr.f32.mxu0 0.0
        %642 = vmatmul.mubr.f32.gmra.mxu0 %v502
        %v643 = vpop.f32.mrf.mxu0
        %v644 = vadd.f32 0.0, %v643
        %v645 = vpop.f32.mrf.mxu0
        %646 = vmatprep.mubr.f32.mxu0 0.0
        %647 = vmatmul.mubr.f32.gmra.mxu0 %v505
        %v648 = vpop.f32.mrf.mxu0
        %v649 = vadd.f32 0.0, %v648
        %v650 = vpop.f32.mrf.mxu0
        %651 = vdwg.mxu0
        %652 = vmatprep.subr.mxu0 0.0
        %653 = vmatpush1.msra.mxu0 0.0
        %654 = vmatprep.subr.mxu0 0.0
        %655 = vmatpush1.msra.mxu0 0.0
        %656 = vmatprep.subr.mxu0 0.0
        %657 = vmatpush1.msra.mxu0 0.0
        %658 = vmatprep.subr.mxu0 0.0
        %659 = vmatpush1.msra.mxu0 0.0
        %660 = vmatprep.subr.mxu0 0.0
        %661 = vmatpush1.msra.mxu0 0.0
        %662 = vmatprep.subr.mxu0 0.0
        %663 = vmatpush1.msra.mxu0 0.0
        %664 = vmatprep.subr.mxu0 0.0
        %665 = vmatpush1.msra.mxu0 0.0
        %666 = vmatprep.subr.mxu0 0.0
        %667 = vmatpush1.msra.mxu0 0.0
        %668 = vmatprep.subr.mxu0 0.0
        %669 = vmatpush1.msra.mxu0 0.0
        %670 = vmatprep.subr.mxu0 0.0
        %671 = vmatpush1.msra.mxu0 0.0
        %672 = vmatprep.subr.mxu0 0.0
        %673 = vmatpush1.msra.mxu0 0.0
        %674 = vmatprep.subr.mxu0 0.0
        %675 = vmatpush1.msra.mxu0 0.0
        %676 = vmatprep.subr.mxu0 0.0
        %677 = vmatpush1.msra.mxu0 %v400
        %678 = vmatprep.subr.mxu0 0.0
        %679 = vmatpush1.msra.mxu0 %v395
        %680 = vmatprep.subr.mxu0 0.0
        %681 = vmatpush1.msra.mxu0 %v390
        %682 = vmatprep.subr.mxu0 0.0
        %683 = vmatpush1.msra.mxu0 %v385
        %684 = vmatprep.subr.mxu0 0.0
        %685 = vmatpush2.msra.mxu0 0.0
        %686 = vmatprep.subr.mxu0 0.0
        %687 = vmatpush2.msra.mxu0 0.0
        %688 = vmatprep.subr.mxu0 0.0
        %689 = vmatpush2.msra.mxu0 0.0
        %690 = vmatprep.subr.mxu0 0.0
        %691 = vmatpush2.msra.mxu0 0.0
        %692 = vmatprep.subr.mxu0 0.0
        %693 = vmatpush2.msra.mxu0 0.0
        %694 = vmatprep.subr.mxu0 0.0
        %695 = vmatpush2.msra.mxu0 0.0
        %696 = vmatprep.subr.mxu0 0.0
        %697 = vmatpush2.msra.mxu0 0.0
        %698 = vmatprep.subr.mxu0 0.0
        %699 = vmatpush2.msra.mxu0 0.0
        %700 = vmatprep.subr.mxu0 0.0
        %701 = vmatpush2.msra.mxu0 0.0
        %702 = vmatprep.subr.mxu0 0.0
        %703 = vmatpush2.msra.mxu0 0.0
        %704 = vmatprep.subr.mxu0 0.0
        %705 = vmatpush2.msra.mxu0 0.0
        %706 = vmatprep.subr.mxu0 0.0
        %707 = vmatpush2.msra.mxu0 0.0
        %708 = vmatprep.subr.mxu0 0.0
        %709 = vmatpush2.msra.mxu0 0.0
        %710 = vmatprep.subr.mxu0 0.0
        %711 = vmatpush2.msra.mxu0 0.0
        %712 = vmatprep.subr.mxu0 0.0
        %713 = vmatpush2.msra.mxu0 0.0
        %714 = vmatprep.subr.mxu0 0.0
        %715 = vmatpush2.msra.mxu0 0.0
        %716 = vmatprep.mubr.f32.mxu0 0.0
        %717 = vmatmul.mubr.f32.gmra.mxu0 %v460
        %v718 = vpop.f32.mrf.mxu0
        %v719 = vadd.f32 0.0, %v718
        %v720 = vpop.f32.mrf.mxu0
        %721 = vmatprep.mubr.f32.mxu0 0.0
        %722 = vmatmul.mubr.f32.gmra.mxu0 %v463
        %v723 = vpop.f32.mrf.mxu0
        %v724 = vadd.f32 0.0, %v723
        %v725 = vpop.f32.mrf.mxu0
        %726 = vmatprep.mubr.f32.mxu0 0.0
        %727 = vmatmul.mubr.f32.gmra.mxu0 %v466
        %v728 = vpop.f32.mrf.mxu0
        %v729 = vadd.f32 0.0, %v728
        %v730 = vpop.f32.mrf.mxu0
        %731 = vmatprep.mubr.f32.mxu0 0.0
        %732 = vmatmul.mubr.f32.gmra.mxu0 %v469
        %v733 = vpop.f32.mrf.mxu0
        %v734 = vadd.f32 0.0, %v733
        %v735 = vpop.f32.mrf.mxu0
        %736 = vmatprep.mubr.f32.mxu0 0.0
        %737 = vmatmul.mubr.f32.gmra.mxu0 %v472
        %v738 = vpop.f32.mrf.mxu0
        %v739 = vadd.f32 0.0, %v738
        %v740 = vpop.f32.mrf.mxu0
        %741 = vmatprep.mubr.f32.mxu0 0.0
        %742 = vmatmul.mubr.f32.gmra.mxu0 %v475
        %v743 = vpop.f32.mrf.mxu0
        %v744 = vadd.f32 0.0, %v743
        %v745 = vpop.f32.mrf.mxu0
        %746 = vmatprep.mubr.f32.mxu0 0.0
        %747 = vmatmul.mubr.f32.gmra.mxu0 %v478
        %v748 = vpop.f32.mrf.mxu0
        %v749 = vadd.f32 0.0, %v748
        %v750 = vpop.f32.mrf.mxu0
        %751 = vmatprep.mubr.f32.mxu0 0.0
        %752 = vmatmul.mubr.f32.gmra.mxu0 %v481
        %v753 = vpop.f32.mrf.mxu0
        %v754 = vadd.f32 0.0, %v753
        %v755 = vpop.f32.mrf.mxu0
        %756 = vmatprep.mubr.f32.mxu0 0.0
        %757 = vmatmul.mubr.f32.gmra.mxu0 %v484
        %v758 = vpop.f32.mrf.mxu0
        %v759 = vadd.f32 0.0, %v758
        %v760 = vpop.f32.mrf.mxu0
        %761 = vmatprep.mubr.f32.mxu0 0.0
        %762 = vmatmul.mubr.f32.gmra.mxu0 %v487
        %v763 = vpop.f32.mrf.mxu0
        %v764 = vadd.f32 0.0, %v763
        %v765 = vpop.f32.mrf.mxu0
        %766 = vmatprep.mubr.f32.mxu0 0.0
        %767 = vmatmul.mubr.f32.gmra.mxu0 %v490
        %v768 = vpop.f32.mrf.mxu0
        %v769 = vadd.f32 0.0, %v768
        %v770 = vpop.f32.mrf.mxu0
        %771 = vmatprep.mubr.f32.mxu0 0.0
        %772 = vmatmul.mubr.f32.gmra.mxu0 %v493
        %v773 = vpop.f32.mrf.mxu0
        %v774 = vadd.f32 0.0, %v773
        %v775 = vpop.f32.mrf.mxu0
        %776 = vmatprep.mubr.f32.mxu0 0.0
        %777 = vmatmul.mubr.f32.gmra.mxu0 %v496
        %v778 = vpop.f32.mrf.mxu0
        %v779 = vadd.f32 0.0, %v778
        %v780 = vpop.f32.mrf.mxu0
        %781 = vmatprep.mubr.f32.mxu0 0.0
        %782 = vmatmul.mubr.f32.gmra.mxu0 %v499
        %v783 = vpop.f32.mrf.mxu0
        %v784 = vadd.f32 0.0, %v783
        %v785 = vpop.f32.mrf.mxu0
        %786 = vmatprep.mubr.f32.mxu0 0.0
        %787 = vmatmul.mubr.f32.gmra.mxu0 %v502
        %v788 = vpop.f32.mrf.mxu0
        %v789 = vadd.f32 0.0, %v788
        %v790 = vpop.f32.mrf.mxu0
        %791 = vmatprep.mubr.f32.mxu0 0.0
        %792 = vmatmul.mubr.f32.gmra.mxu0 %v505
        %v793 = vpop.f32.mrf.mxu0
        %v794 = vadd.f32 0.0, %v793
        %v795 = vpop.f32.mrf.mxu0
        %796 = vdwg.mxu0
        %797 = vmatprep.subr.mxu0 0.0
        %798 = vmatpush1.msra.mxu0 0.0
        %799 = vmatprep.subr.mxu0 0.0
        %800 = vmatpush1.msra.mxu0 0.0
        %801 = vmatprep.subr.mxu0 0.0
        %802 = vmatpush1.msra.mxu0 0.0
        %803 = vmatprep.subr.mxu0 0.0
        %804 = vmatpush1.msra.mxu0 0.0
        %805 = vmatprep.subr.mxu0 0.0
        %806 = vmatpush1.msra.mxu0 0.0
        %807 = vmatprep.subr.mxu0 0.0
        %808 = vmatpush1.msra.mxu0 0.0
        %809 = vmatprep.subr.mxu0 0.0
        %810 = vmatpush1.msra.mxu0 0.0
        %811 = vmatprep.subr.mxu0 0.0
        %812 = vmatpush1.msra.mxu0 0.0
        %813 = vmatprep.subr.mxu0 0.0
        %814 = vmatpush1.msra.mxu0 0.0
        %815 = vmatprep.subr.mxu0 0.0
        %816 = vmatpush1.msra.mxu0 0.0
        %817 = vmatprep.subr.mxu0 0.0
        %818 = vmatpush1.msra.mxu0 0.0
        %819 = vmatprep.subr.mxu0 0.0
        %820 = vmatpush1.msra.mxu0 0.0
        %821 = vmatprep.subr.mxu0 0.0
        %822 = vmatpush1.msra.mxu0 %v420
        %823 = vmatprep.subr.mxu0 0.0
        %824 = vmatpush1.msra.mxu0 %v415
        %825 = vmatprep.subr.mxu0 0.0
        %826 = vmatpush1.msra.mxu0 %v410
        %827 = vmatprep.subr.mxu0 0.0
        %828 = vmatpush1.msra.mxu0 %v405
        %829 = vmatprep.subr.mxu0 0.0
        %830 = vmatpush2.msra.mxu0 0.0
        %831 = vmatprep.subr.mxu0 0.0
        %832 = vmatpush2.msra.mxu0 0.0
        %833 = vmatprep.subr.mxu0 0.0
        %834 = vmatpush2.msra.mxu0 0.0
        %835 = vmatprep.subr.mxu0 0.0
        %836 = vmatpush2.msra.mxu0 0.0
        %837 = vmatprep.subr.mxu0 0.0
        %838 = vmatpush2.msra.mxu0 0.0
        %839 = vmatprep.subr.mxu0 0.0
        %840 = vmatpush2.msra.mxu0 0.0
        %841 = vmatprep.subr.mxu0 0.0
        %842 = vmatpush2.msra.mxu0 0.0
        %843 = vmatprep.subr.mxu0 0.0
        %844 = vmatpush2.msra.mxu0 0.0
        %845 = vmatprep.subr.mxu0 0.0
        %846 = vmatpush2.msra.mxu0 0.0
        %847 = vmatprep.subr.mxu0 0.0
        %848 = vmatpush2.msra.mxu0 0.0
        %849 = vmatprep.subr.mxu0 0.0
        %850 = vmatpush2.msra.mxu0 0.0
        %851 = vmatprep.subr.mxu0 0.0
        %852 = vmatpush2.msra.mxu0 0.0
        %853 = vmatprep.subr.mxu0 0.0
        %854 = vmatpush2.msra.mxu0 0.0
        %855 = vmatprep.subr.mxu0 0.0
        %856 = vmatpush2.msra.mxu0 0.0
        %857 = vmatprep.subr.mxu0 0.0
        %858 = vmatpush2.msra.mxu0 0.0
        %859 = vmatprep.subr.mxu0 0.0
        %860 = vmatpush2.msra.mxu0 0.0
        %861 = vmatprep.mubr.f32.mxu0 0.0
        %862 = vmatmul.mubr.f32.gmra.mxu0 %v460
        %v863 = vpop.f32.mrf.mxu0
        %v864 = vadd.f32 0.0, %v863
        %v865 = vpop.f32.mrf.mxu0
        %866 = vmatprep.mubr.f32.mxu0 0.0
        %867 = vmatmul.mubr.f32.gmra.mxu0 %v463
        %v868 = vpop.f32.mrf.mxu0
        %v869 = vadd.f32 0.0, %v868
        %v870 = vpop.f32.mrf.mxu0
        %871 = vmatprep.mubr.f32.mxu0 0.0
        %872 = vmatmul.mubr.f32.gmra.mxu0 %v466
        %v873 = vpop.f32.mrf.mxu0
        %v874 = vadd.f32 0.0, %v873
        %v875 = vpop.f32.mrf.mxu0
        %876 = vmatprep.mubr.f32.mxu0 0.0
        %877 = vmatmul.mubr.f32.gmra.mxu0 %v469
        %v878 = vpop.f32.mrf.mxu0
        %v879 = vadd.f32 0.0, %v878
        %v880 = vpop.f32.mrf.mxu0
        %881 = vmatprep.mubr.f32.mxu0 0.0
        %882 = vmatmul.mubr.f32.gmra.mxu0 %v472
        %v883 = vpop.f32.mrf.mxu0
        %v884 = vadd.f32 0.0, %v883
        %v885 = vpop.f32.mrf.mxu0
        %886 = vmatprep.mubr.f32.mxu0 0.0
        %887 = vmatmul.mubr.f32.gmra.mxu0 %v475
        %v888 = vpop.f32.mrf.mxu0
        %v889 = vadd.f32 0.0, %v888
        %v890 = vpop.f32.mrf.mxu0
        %891 = vmatprep.mubr.f32.mxu0 0.0
        %892 = vmatmul.mubr.f32.gmra.mxu0 %v478
        %v893 = vpop.f32.mrf.mxu0
        %v894 = vadd.f32 0.0, %v893
        %v895 = vpop.f32.mrf.mxu0
        %896 = vmatprep.mubr.f32.mxu0 0.0
        %897 = vmatmul.mubr.f32.gmra.mxu0 %v481
        %v898 = vpop.f32.mrf.mxu0
        %v899 = vadd.f32 0.0, %v898
        %v900 = vpop.f32.mrf.mxu0
        %901 = vmatprep.mubr.f32.mxu0 0.0
        %902 = vmatmul.mubr.f32.gmra.mxu0 %v484
        %v903 = vpop.f32.mrf.mxu0
        %v904 = vadd.f32 0.0, %v903
        %v905 = vpop.f32.mrf.mxu0
        %906 = vmatprep.mubr.f32.mxu0 0.0
        %907 = vmatmul.mubr.f32.gmra.mxu0 %v487
        %v908 = vpop.f32.mrf.mxu0
        %v909 = vadd.f32 0.0, %v908
        %v910 = vpop.f32.mrf.mxu0
        %911 = vmatprep.mubr.f32.mxu0 0.0
        %912 = vmatmul.mubr.f32.gmra.mxu0 %v490
        %v913 = vpop.f32.mrf.mxu0
        %v914 = vadd.f32 0.0, %v913
        %v915 = vpop.f32.mrf.mxu0
        %916 = vmatprep.mubr.f32.mxu0 0.0
        %917 = vmatmul.mubr.f32.gmra.mxu0 %v493
        %v918 = vpop.f32.mrf.mxu0
        %v919 = vadd.f32 0.0, %v918
        %v920 = vpop.f32.mrf.mxu0
        %921 = vmatprep.mubr.f32.mxu0 0.0
        %922 = vmatmul.mubr.f32.gmra.mxu0 %v496
        %v923 = vpop.f32.mrf.mxu0
        %v924 = vadd.f32 0.0, %v923
        %v925 = vpop.f32.mrf.mxu0
        %926 = vmatprep.mubr.f32.mxu0 0.0
        %927 = vmatmul.mubr.f32.gmra.mxu0 %v499
        %v928 = vpop.f32.mrf.mxu0
        %v929 = vadd.f32 0.0, %v928
        %v930 = vpop.f32.mrf.mxu0
        %931 = vmatprep.mubr.f32.mxu0 0.0
        %932 = vmatmul.mubr.f32.gmra.mxu0 %v502
        %v933 = vpop.f32.mrf.mxu0
        %v934 = vadd.f32 0.0, %v933
        %v935 = vpop.f32.mrf.mxu0
        %936 = vmatprep.mubr.f32.mxu0 0.0
        %937 = vmatmul.mubr.f32.gmra.mxu0 %v505
        %v938 = vpop.f32.mrf.mxu0
        %v939 = vadd.f32 0.0, %v938
        %v940 = vpop.f32.mrf.mxu0
        %941 = vdwg.mxu0
        %942 = vmatprep.subr.mxu0 0.0
        %943 = vmatpush1.msra.mxu0 0.0
        %944 = vmatprep.subr.mxu0 0.0
        %945 = vmatpush1.msra.mxu0 0.0
        %946 = vmatprep.subr.mxu0 0.0
        %947 = vmatpush1.msra.mxu0 0.0
        %948 = vmatprep.subr.mxu0 0.0
        %949 = vmatpush1.msra.mxu0 0.0
        %950 = vmatprep.subr.mxu0 0.0
        %951 = vmatpush1.msra.mxu0 0.0
        %952 = vmatprep.subr.mxu0 0.0
        %953 = vmatpush1.msra.mxu0 0.0
        %954 = vmatprep.subr.mxu0 0.0
        %955 = vmatpush1.msra.mxu0 0.0
        %956 = vmatprep.subr.mxu0 0.0
        %957 = vmatpush1.msra.mxu0 0.0
        %958 = vmatprep.subr.mxu0 0.0
        %959 = vmatpush1.msra.mxu0 0.0
        %960 = vmatprep.subr.mxu0 0.0
        %961 = vmatpush1.msra.mxu0 0.0
        %962 = vmatprep.subr.mxu0 0.0
        %963 = vmatpush1.msra.mxu0 0.0
        %964 = vmatprep.subr.mxu0 0.0
        %965 = vmatpush1.msra.mxu0 0.0
        %966 = vmatprep.subr.mxu0 0.0
        %967 = vmatpush1.msra.mxu0 %v440
        %968 = vmatprep.subr.mxu0 0.0
        %969 = vmatpush1.msra.mxu0 %v435
        %970 = vmatprep.subr.mxu0 0.0
        %971 = vmatpush1.msra.mxu0 %v430
        %972 = vmatprep.subr.mxu0 0.0
        %973 = vmatpush1.msra.mxu0 %v425
        %974 = vmatprep.subr.mxu0 0.0
        %975 = vmatpush2.msra.mxu0 0.0
        %976 = vmatprep.subr.mxu0 0.0
        %977 = vmatpush2.msra.mxu0 0.0
        %978 = vmatprep.subr.mxu0 0.0
        %979 = vmatpush2.msra.mxu0 0.0
        %980 = vmatprep.subr.mxu0 0.0
        %981 = vmatpush2.msra.mxu0 0.0
        %982 = vmatprep.subr.mxu0 0.0
        %983 = vmatpush2.msra.mxu0 0.0
        %984 = vmatprep.subr.mxu0 0.0
        %985 = vmatpush2.msra.mxu0 0.0
        %986 = vmatprep.subr.mxu0 0.0
        %987 = vmatpush2.msra.mxu0 0.0
        %988 = vmatprep.subr.mxu0 0.0
        %989 = vmatpush2.msra.mxu0 0.0
        %990 = vmatprep.subr.mxu0 0.0
        %991 = vmatpush2.msra.mxu0 0.0
        %992 = vmatprep.subr.mxu0 0.0
        %993 = vmatpush2.msra.mxu0 0.0
        %994 = vmatprep.subr.mxu0 0.0
        %995 = vmatpush2.msra.mxu0 0.0
        %996 = vmatprep.subr.mxu0 0.0
        %997 = vmatpush2.msra.mxu0 0.0
        %998 = vmatprep.subr.mxu0 0.0
        %999 = vmatpush2.msra.mxu0 0.0
        %1000 = vmatprep.subr.mxu0 0.0
        %1001 = vmatpush2.msra.mxu0 0.0
        %1002 = vmatprep.subr.mxu0 0.0
        %1003 = vmatpush2.msra.mxu0 0.0
        %1004 = vmatprep.subr.mxu0 0.0
        %1005 = vmatpush2.msra.mxu0 0.0
        %1006 = vmatprep.mubr.f32.mxu0 0.0
        %1007 = vmatmul.mubr.f32.gmra.mxu0 %v460
        %v1008 = vpop.f32.mrf.mxu0
        %v1009 = vadd.f32 0.0, %v1008
        %v1010 = vpop.f32.mrf.mxu0
        %1011 = vmatprep.mubr.f32.mxu0 0.0
        %1012 = vmatmul.mubr.f32.gmra.mxu0 %v463
        %v1013 = vpop.f32.mrf.mxu0
        %v1014 = vadd.f32 0.0, %v1013
        %v1015 = vpop.f32.mrf.mxu0
        %1016 = vmatprep.mubr.f32.mxu0 0.0
        %1017 = vmatmul.mubr.f32.gmra.mxu0 %v466
        %v1018 = vpop.f32.mrf.mxu0
        %v1019 = vadd.f32 0.0, %v1018
        %v1020 = vpop.f32.mrf.mxu0
        %1021 = vmatprep.mubr.f32.mxu0 0.0
        %1022 = vmatmul.mubr.f32.gmra.mxu0 %v469
        %v1023 = vpop.f32.mrf.mxu0
        %v1024 = vadd.f32 0.0, %v1023
        %v1025 = vpop.f32.mrf.mxu0
        %1026 = vmatprep.mubr.f32.mxu0 0.0
        %1027 = vmatmul.mubr.f32.gmra.mxu0 %v472
        %v1028 = vpop.f32.mrf.mxu0
        %v1029 = vadd.f32 0.0, %v1028
        %v1030 = vpop.f32.mrf.mxu0
        %1031 = vmatprep.mubr.f32.mxu0 0.0
        %1032 = vmatmul.mubr.f32.gmra.mxu0 %v475
        %v1033 = vpop.f32.mrf.mxu0
        %v1034 = vadd.f32 0.0, %v1033
        %v1035 = vpop.f32.mrf.mxu0
        %1036 = vmatprep.mubr.f32.mxu0 0.0
        %1037 = vmatmul.mubr.f32.gmra.mxu0 %v478
        %v1038 = vpop.f32.mrf.mxu0
        %v1039 = vadd.f32 0.0, %v1038
        %v1040 = vpop.f32.mrf.mxu0
        %1041 = vmatprep.mubr.f32.mxu0 0.0
        %1042 = vmatmul.mubr.f32.gmra.mxu0 %v481
        %v1043 = vpop.f32.mrf.mxu0
        %v1044 = vadd.f32 0.0, %v1043
        %v1045 = vpop.f32.mrf.mxu0
        %1046 = vmatprep.mubr.f32.mxu0 0.0
        %1047 = vmatmul.mubr.f32.gmra.mxu0 %v484
        %v1048 = vpop.f32.mrf.mxu0
        %v1049 = vadd.f32 0.0, %v1048
        %v1050 = vpop.f32.mrf.mxu0
        %1051 = vmatprep.mubr.f32.mxu0 0.0
        %1052 = vmatmul.mubr.f32.gmra.mxu0 %v487
        %v1053 = vpop.f32.mrf.mxu0
        %v1054 = vadd.f32 0.0, %v1053
        %v1055 = vpop.f32.mrf.mxu0
        %1056 = vmatprep.mubr.f32.mxu0 0.0
        %1057 = vmatmul.mubr.f32.gmra.mxu0 %v490
        %v1058 = vpop.f32.mrf.mxu0
        %v1059 = vadd.f32 0.0, %v1058
        %v1060 = vpop.f32.mrf.mxu0
        %1061 = vmatprep.mubr.f32.mxu0 0.0
        %1062 = vmatmul.mubr.f32.gmra.mxu0 %v493
        %v1063 = vpop.f32.mrf.mxu0
        %v1064 = vadd.f32 0.0, %v1063
        %v1065 = vpop.f32.mrf.mxu0
        %1066 = vmatprep.mubr.f32.mxu0 0.0
        %1067 = vmatmul.mubr.f32.gmra.mxu0 %v496
        %v1068 = vpop.f32.mrf.mxu0
        %v1069 = vadd.f32 0.0, %v1068
        %v1070 = vpop.f32.mrf.mxu0
        %1071 = vmatprep.mubr.f32.mxu0 0.0
        %1072 = vmatmul.mubr.f32.gmra.mxu0 %v499
        %v1073 = vpop.f32.mrf.mxu0
        %v1074 = vadd.f32 0.0, %v1073
        %v1075 = vpop.f32.mrf.mxu0
        %1076 = vmatprep.mubr.f32.mxu0 0.0
        %1077 = vmatmul.mubr.f32.gmra.mxu0 %v502
        %v1078 = vpop.f32.mrf.mxu0
        %v1079 = vadd.f32 0.0, %v1078
        %v1080 = vpop.f32.mrf.mxu0
        %1081 = vmatprep.mubr.f32.mxu0 0.0
        %1082 = vmatmul.mubr.f32.gmra.mxu0 %v505
        %v1083 = vpop.f32.mrf.mxu0
        %v1084 = vadd.f32 0.0, %v1083
        %v1085 = vpop.f32.mrf.mxu0
        %1086 = vdwg.mxu0
        %1087 = vst [vmem:[%s219] sm:$0xff] %v574
        %1088 = vst [vmem:[%s219 + $0x8] sm:$0xff] %v579
        %1089 = vst [vmem:[%s219 + $0x10] sm:$0xff] %v584
        %1090 = vst [vmem:[%s219 + $0x18] sm:$0xff] %v589
        %1091 = vst [vmem:[%s219 + $0x20] sm:$0xff] %v594
        %1092 = vst [vmem:[%s219 + $0x28] sm:$0xff] %v599
        %1093 = vst [vmem:[%s219 + $0x30] sm:$0xff] %v604
        %1094 = vst [vmem:[%s219 + $0x38] sm:$0xff] %v609
        %1095 = vst [vmem:[%s219 + $0x40] sm:$0xff] %v614
        %1096 = vst [vmem:[%s219 + $0x48] sm:$0xff] %v619
        %1097 = vst [vmem:[%s219 + $0x50] sm:$0xff] %v624
        %1098 = vst [vmem:[%s219 + $0x58] sm:$0xff] %v629
        %1099 = vst [vmem:[%s219 + $0x60] sm:$0xff] %v634
        %1100 = vst [vmem:[%s219 + $0x68] sm:$0xff] %v639
        %1101 = vst [vmem:[%s219 + $0x70] sm:$0xff] %v644
        %1102 = vst [vmem:[%s219 + $0x78] sm:$0xff] %v649
        %1103 = vst [vmem:[%s219 + $0x80] sm:$0xff] %v719
        %1104 = vst [vmem:[%s219 + $0x88] sm:$0xff] %v724
        %1105 = vst [vmem:[%s219 + $0x90] sm:$0xff] %v729
        %1106 = vst [vmem:[%s219 + $0x98] sm:$0xff] %v734
        %1107 = vst [vmem:[%s219 + $0xa0] sm:$0xff] %v739
        %1108 = vst [vmem:[%s219 + $0xa8] sm:$0xff] %v744
        %1109 = vst [vmem:[%s219 + $0xb0] sm:$0xff] %v749
        %1110 = vst [vmem:[%s219 + $0xb8] sm:$0xff] %v754
        %1111 = vst [vmem:[%s219 + $0xc0] sm:$0xff] %v759
        %1112 = vst [vmem:[%s219 + $0xc8] sm:$0xff] %v764
        %1113 = vst [vmem:[%s219 + $0xd0] sm:$0xff] %v769
        %1114 = vst [vmem:[%s219 + $0xd8] sm:$0xff] %v774
        %1115 = vst [vmem:[%s219 + $0xe0] sm:$0xff] %v779
        %1116 = vst [vmem:[%s219 + $0xe8] sm:$0xff] %v784
        %1117 = vst [vmem:[%s219 + $0xf0] sm:$0xff] %v789
        %1118 = vst [vmem:[%s219 + $0xf8] sm:$0xff] %v794
        %1119 = vst [vmem:[%s219 + $0x100] sm:$0xff] %v864
        %1120 = vst [vmem:[%s219 + $0x108] sm:$0xff] %v869
        %1121 = vst [vmem:[%s219 + $0x110] sm:$0xff] %v874
        %1122 = vst [vmem:[%s219 + $0x118] sm:$0xff] %v879
        %1123 = vst [vmem:[%s219 + $0x120] sm:$0xff] %v884
        %1124 = vst [vmem:[%s219 + $0x128] sm:$0xff] %v889
        %1125 = vst [vmem:[%s219 + $0x130] sm:$0xff] %v894
        %1126 = vst [vmem:[%s219 + $0x138] sm:$0xff] %v899
        %1127 = vst [vmem:[%s219 + $0x140] sm:$0xff] %v904
        %1128 = vst [vmem:[%s219 + $0x148] sm:$0xff] %v909
        %1129 = vst [vmem:[%s219 + $0x150] sm:$0xff] %v914
        %1130 = vst [vmem:[%s219 + $0x158] sm:$0xff] %v919
        %1131 = vst [vmem:[%s219 + $0x160] sm:$0xff] %v924
        %1132 = vst [vmem:[%s219 + $0x168] sm:$0xff] %v929
        %1133 = vst [vmem:[%s219 + $0x170] sm:$0xff] %v934
        %1134 = vst [vmem:[%s219 + $0x178] sm:$0xff] %v939
        %1135 = vst [vmem:[%s219 + $0x180] sm:$0xff] %v1009
        %1136 = vst [vmem:[%s219 + $0x188] sm:$0xff] %v1014
        %1137 = vst [vmem:[%s219 + $0x190] sm:$0xff] %v1019
        %1138 = vst [vmem:[%s219 + $0x198] sm:$0xff] %v1024
        %1139 = vst [vmem:[%s219 + $0x1a0] sm:$0xff] %v1029
        %1140 = vst [vmem:[%s219 + $0x1a8] sm:$0xff] %v1034
        %1141 = vst [vmem:[%s219 + $0x1b0] sm:$0xff] %v1039
        %1142 = vst [vmem:[%s219 + $0x1b8] sm:$0xff] %v1044
        %1143 = vst [vmem:[%s219 + $0x1c0] sm:$0xff] %v1049
        %1144 = vst [vmem:[%s219 + $0x1c8] sm:$0xff] %v1054
        %1145 = vst [vmem:[%s219 + $0x1d0] sm:$0xff] %v1059
        %1146 = vst [vmem:[%s219 + $0x1d8] sm:$0xff] %v1064
        %1147 = vst [vmem:[%s219 + $0x1e0] sm:$0xff] %v1069
        %1148 = vst [vmem:[%s219 + $0x1e8] sm:$0xff] %v1074
        %1149 = vst [vmem:[%s219 + $0x1f0] sm:$0xff] %v1079
        %1150 = vst [vmem:[%s219 + $0x1f8] sm:$0xff] %v1084
        %s1151 = sand.u32 %s115, 1
        %s1152 = scalar_lea.sflag [#allocation4], %s1151
        %s1153 = sand.u32 %s115, 1
        %s1154 = smul.addr %s1153, 512
        %s1155 = scalar_lea.vmem [#allocation5], %s1154
        // Predicated region
        $region37: #{tpu_custom_call.1} parent=31 // pred_check
          %p1156 = pneg %p125
        $region38: #{tpu_custom_call.1} parent=31 // pred_check_branch
          %1158 = sbr.rel (%p1156) target = $region40
        $region39: #{tpu_custom_call.1} parent=31 // pred_region
          %s1159 = smul.u32 4, %s24
          %s1160 = smul.u32 16, %s25
          %s1162 = ssub.s32 8192, 8192
          %1163 = vsyncadd %s1152, %s1162
          %s1164 = smul.addr %s1159, 16
          %s1165 = sadd.s32 %s1160, %s1164
          %s1166 = smul.addr %s1165, 128
          %s1167 = scalar_lea.hbm %s3, %s1166
          %s1168 = sshll.u32 %s1155, 4
          %s1169 = int_to_ptr.vmem [resolvable:$true] %s1168
          %1174 = dma.vmem_to_hbm [thread:$0]  %s1169, 8192, %s1167, %s1152, 128, 128, 8
        $region40: #{tpu_custom_call.1} parent=31 // pred_fallthru
          _
      $region32: #{tpu_custom_call.1} parent=5 // pred_fallthru
        _
      %p1175 = scmp.le.s32.totalorder 2, %s15
      // Predicated region
      $region41: #{tpu_custom_call.1} parent=5 // pred_check
        %p1176 = pneg %p1175
      $region42: #{tpu_custom_call.1} parent=5 // pred_check_branch
        %1178 = sbr.rel (%p1176) target = $region44
      $region43: #{tpu_custom_call.1} parent=5 // pred_region
        %s1179 = ssub.s32 %s15, 2
        // Predicated region
        $region45: #{tpu_custom_call.1} parent=43 // pred_check
          %p1180 = pneg %p131
        $region46: #{tpu_custom_call.1} parent=43 // pred_check_branch
          %1182 = sbr.rel (%p1180) target = $region48
        $region47: #{tpu_custom_call.1} parent=43 // pred_region
          %s1183 = sand.u32 %s116, 1
          %s1184 = scalar_lea.sflag [#allocation4], %s1183
          %s1185 = sand.u32 %s116, 1
          %s1186 = smul.addr %s1185, 512
          %s1187 = scalar_lea.vmem [#allocation5], %s1186
          %1188 = dma.done %s1184, 8192
        $region48: #{tpu_custom_call.1} parent=43 // pred_fallthru
          _
      $region44: #{tpu_custom_call.1} parent=5 // pred_fallthru
        _
    $region6: #{tpu_custom_call.1} parent=1 // loop_footer
      %s19 = sadd.s32 1, %s15
    $region7: #{tpu_custom_call.1} parent=1 // loop_footer_branch
      %14 = sbr.rel target = $region3
    $region8: #{tpu_custom_call.1} parent=1 // loop_exit
      _
    %1189 = vsyncpa [#allocation3], 1
    %s1190 = scalar_lea.sflag [#allocation3], 1
    %1191 = vsyncpa %s1190, 1
    %1192 = vsyncpa [#allocation4], 1
    %s1193 = scalar_lea.sflag [#allocation4], 1
    %1194 = vsyncpa %s1193, 1

</llo_original>
